<compile_context>
chip_gen: v7x
topology: tpu7x:2x2x1
jax: 0.10.0
libtpu: 0.0.40
codegen_flags: <defaults>
</compile_context>

<pallas_src>
import jax
import jax.numpy as jnp
from jax.experimental import pallas as pl
from jax.experimental.pallas import tpu as pltpu

# Small, module-consistent shapes (nn.Conv2d(1, 128, 3, 1))
N, C_IN, H, W = 2, 1, 16, 16
HIDDEN = 128
K = 3
H_OUT, W_OUT = H - K + 1, W - K + 1     # 14, 14 (stride 1, no padding)
H_P, W_P = H_OUT // 2, W_OUT // 2       # 7, 7   (MaxPool2d(2, 2))
G = N * H_P * W_P                       # 98 pooled pixels per pool-member
G_PAD = 104                             # pad each member block to a sublane multiple of 8
KK = C_IN * K * K                       # 9
KK_PAD = 16                             # pad contracting dim (zeros) to the bf16 tile size
CNT = 4 * G                             # = N * H_OUT * W_OUT = 392 (true BN element count)
EPS = 1e-5                              # BatchNorm2d default eps


def conv_bn_relu_pool_kernel(p_ref, w_ref, gb_ref, o_ref):
    """p_ref:  (4*G_PAD, KK_PAD) bf16 pool-member-major im2col patches (pad rows are zero)
       w_ref:  (KK_PAD, HIDDEN)  bf16 conv weights
       gb_ref: (2, HIDDEN)       f32  row 0 = gamma, row 1 = beta
       o_ref:  (G_PAD, HIDDEN)   f32  pooled output (last G_PAD-G rows are garbage, sliced
                                      off in the wrapper)."""
    # Conv2d as ONE MXU matmul (bf16 in, f32 accumulate). No bias: it cancels through
    # training-mode BN batch stats, and zero pad rows then contribute 0 to the sums below.
    y = jnp.dot(p_ref[...], w_ref[...], preferred_element_type=jnp.float32)  # (4*G_PAD, H)

    # BatchNorm2d training-mode batch statistics (biased variance) over (N, H_out, W_out),
    # one pass: mean = S/cnt, var = SS/cnt - mean^2 (clamped >= 0 against f32 cancellation).
    inv_cnt = 1.0 / float(CNT)
    s = jnp.sum(y, axis=0, keepdims=True)                      # (1, HIDDEN)
    ss = jnp.sum(y * y, axis=0, keepdims=True)                 # (1, HIDDEN)
    mean = s * inv_cnt
    var = jnp.maximum(ss * inv_cnt - mean * mean, 0.0)
    scale = gb_ref[0:1, :] * jax.lax.rsqrt(var + EPS)          # rsqrt -> EUP slot
    shift = gb_ref[1:2, :] - mean * scale

    # BN affine per sublane-aligned 104-row member block (implicit (1,H) broadcast into the
    # FMA — no materialized slabs), MaxPool2d(2,2) == pairwise max of the 4 blocks, ReLU once
    # on the pooled result (ReLU commutes with max).
    y0 = y[0 * G_PAD:1 * G_PAD, :] * scale + shift
    y1 = y[1 * G_PAD:2 * G_PAD, :] * scale + shift
    y2 = y[2 * G_PAD:3 * G_PAD, :] * scale + shift
    y3 = y[3 * G_PAD:4 * G_PAD, :] * scale + shift
    pooled = jnp.maximum(jnp.maximum(y0, y1), jnp.maximum(y2, y3))
    o_ref[...] = jnp.maximum(pooled, 0.0)
    # TODO(synk): BatchNorm running_mean/running_var updates (training side effect) are not
    # materialized; they do not affect the forward output.


def im2col_member_major(x):
    """x: (N, C_IN, H, W) NCHW -> (4*G_PAD, KK_PAD) bf16, pool-member-major row order,
       each member block zero-padded from G to G_PAD rows."""
    cols = [x[:, :, kh:kh + H_OUT, kw:kw + W_OUT] for kh in range(K) for kw in range(K)]
    p = jnp.stack(cols, axis=-1)                                  # (N, C, Ho, Wo, K*K)
    p = jnp.transpose(p, (0, 2, 3, 1, 4)).reshape(N, H_OUT, W_OUT, KK)
    p = p.reshape(N, H_P, 2, W_P, 2, KK)                          # (n, hp, hm, wp, wm, kk)
    p = jnp.transpose(p, (2, 4, 0, 1, 3, 5)).reshape(4, G, KK)    # member-major
    p = jnp.pad(p, ((0, 0), (0, G_PAD - G), (0, KK_PAD - KK)))    # zero rows/cols (benign)
    return p.reshape(4 * G_PAD, KK_PAD).astype(jnp.bfloat16)


@jax.jit
def conv_feature_extractor(x, w, b, gamma, beta):
    """x: (N, C_IN, H, W) NCHW; w: (HIDDEN, C_IN, K, K); b/gamma/beta: (HIDDEN,).
       Returns NCHW (N, HIDDEN, H_P, W_P), matching the PyTorch module forward."""
    del b  # conv bias cancels exactly under training-mode BN batch statistics
    patches = im2col_member_major(x.astype(jnp.float32))
    wmat = w.reshape(HIDDEN, KK).T                                # (KK, HIDDEN)
    wmat = jnp.pad(wmat, ((0, KK_PAD - KK), (0, 0))).astype(jnp.bfloat16)
    gb = jnp.stack([gamma, beta], axis=0).astype(jnp.float32)     # (2, HIDDEN)

    flops = 2 * (4 * G_PAD) * KK_PAD * HIDDEN + 10 * (4 * G_PAD) * HIDDEN
    bytes_accessed = ((4 * G_PAD) * KK_PAD * 2 + KK_PAD * HIDDEN * 2
                      + 2 * HIDDEN * 4 + G_PAD * HIDDEN * 4)

    pooled = pl.pallas_call(
        conv_bn_relu_pool_kernel,
        out_shape=jax.ShapeDtypeStruct((G_PAD, HIDDEN), jnp.float32),
        in_specs=[pl.BlockSpec(memory_space=pltpu.MemorySpace.VMEM)] * 3,
        out_specs=pl.BlockSpec(memory_space=pltpu.MemorySpace.VMEM),
        compiler_params=pltpu.CompilerParams(allow_input_fusion=[0, 1, 2]),
        cost_estimate=pl.CostEstimate(flops=flops, transcendentals=HIDDEN,
                                      bytes_accessed=bytes_accessed),
    )(patches, wmat, gb)

    # Drop the 6 garbage pad rows; the slice fuses into the NHWC->NCHW transpose.
    return pooled[:G].reshape(N, H_P, W_P, HIDDEN).transpose(0, 3, 1, 2)


def reference(x, w, b, gamma, beta, conv_dtype=jnp.float32):
    """Pure-JAX reference mirroring the PyTorch forward (training-mode BN).
       conv_dtype=bf16 mirrors the kernel's matmul-input precision (f32 accumulation)."""
    cols = [x[:, :, kh:kh + H_OUT, kw:kw + W_OUT] for kh in range(K) for kw in range(K)]
    p = jnp.stack(cols, axis=-1)
    p = jnp.transpose(p, (0, 2, 3, 1, 4)).reshape(N, H_OUT, W_OUT, KK)
    wm = w.reshape(HIDDEN, KK).T
    y = jnp.dot(p.astype(conv_dtype), wm.astype(conv_dtype),
                preferred_element_type=jnp.float32) + b          # (N, Ho, Wo, HIDDEN)
    mean = y.mean(axis=(0, 1, 2))
    var = ((y - mean) ** 2).mean(axis=(0, 1, 2))
    y = (y - mean) / jnp.sqrt(var + EPS) * gamma + beta
    y = jnp.maximum(y, 0.0)
    y = y.reshape(N, H_P, 2, W_P, 2, HIDDEN).max(axis=(2, 4))
    return y.transpose(0, 3, 1, 2)


if __name__ == "__main__":
    key = jax.random.PRNGKey(0)
    kx, kw, kb, kg, kbe = jax.random.split(key, 5)
    x = jax.random.normal(kx, (N, C_IN, H, W), jnp.float32)
    w = 0.1 * jax.random.normal(kw, (HIDDEN, C_IN, K, K), jnp.float32)
    b = 0.1 * jax.random.normal(kb, (HIDDEN,), jnp.float32)
    gamma = 1.0 + 0.1 * jax.random.normal(kg, (HIDDEN,), jnp.float32)
    beta = 0.1 * jax.random.normal(kbe, (HIDDEN,), jnp.float32)

    out = jax.block_until_ready(conv_feature_extractor(x, w, b, gamma, beta))
    assert out.shape == (N, HIDDEN, H_P, W_P), out.shape

    # Precision-matched reference (bf16 conv inputs, f32 accumulation): tight tolerance.
    ref_bf16 = reference(x, w, b, gamma, beta, conv_dtype=jnp.bfloat16)
    assert jnp.allclose(out, ref_bf16, atol=1e-4, rtol=1e-4), \
        float(jnp.max(jnp.abs(out - ref_bf16)))

    # Full-f32 PyTorch-semantics reference: tolerance covers the bf16 conv-input rounding.
    ref_f32 = reference(x, w, b, gamma, beta, conv_dtype=jnp.float32)
    assert jnp.allclose(out, ref_f32, atol=3e-2, rtol=3e-2), \
        float(jnp.max(jnp.abs(out - ref_f32)))

    print("KERNEL_OK")
</pallas_src>

<mosaic_0001>
module attributes {stable_mosaic.version = 11 : i64} {
  func.func @conv_bn_relu_pool_kernel(%arg0: memref<416x16xbf16, #tpu.memory_space<vmem>>, %arg1: memref<16x128xbf16, #tpu.memory_space<vmem>>, %arg2: memref<2x128xf32, #tpu.memory_space<vmem>>, %arg3: memref<104x128xf32, #tpu.memory_space<vmem>>) attributes {dimension_semantics = [], scalar_prefetch = 0 : i64, scratch_operands = 0 : i64, tpu.core_type = #tpu.core_type<tc>} {
    %c0 = arith.constant 0 : index
    %c0_0 = arith.constant 0 : index
    %0 = vector.load %arg0[%c0, %c0_0] : memref<416x16xbf16, #tpu.memory_space<vmem>>, vector<416x16xbf16>
    %c0_1 = arith.constant 0 : index
    %c0_2 = arith.constant 0 : index
    %1 = vector.load %arg1[%c0_1, %c0_2] : memref<16x128xbf16, #tpu.memory_space<vmem>>, vector<16x128xbf16>
    %cst = arith.constant dense<0.000000e+00> : vector<416x128xf32>
    %2 = tpu.matmul %0, %1, %cst {dimension_numbers = #tpu.dot_dimension_numbers<[1], [0], [0], [1], [0, 0, 1, 1], [], []>} : vector<416x16xbf16>, vector<16x128xbf16>, vector<416x128xf32> -> vector<416x128xf32>
    %cst_3 = arith.constant dense<0.000000e+00> : vector<128xf32>
    %3 = vector.multi_reduction <add>, %2, %cst_3 [0] : vector<416x128xf32> to vector<128xf32>
    %4 = vector.shape_cast %3 : vector<128xf32> to vector<1x128xf32>
    %5 = arith.mulf %2, %2 : vector<416x128xf32>
    %cst_4 = arith.constant dense<0.000000e+00> : vector<128xf32>
    %6 = vector.multi_reduction <add>, %5, %cst_4 [0] : vector<416x128xf32> to vector<128xf32>
    %7 = vector.shape_cast %6 : vector<128xf32> to vector<1x128xf32>
    %cst_5 = arith.constant 0.00255102036 : f32
    %8 = vector.broadcast %cst_5 : f32 to vector<1x128xf32>
    %9 = arith.mulf %4, %8 : vector<1x128xf32>
    %cst_6 = arith.constant 0.00255102036 : f32
    %10 = vector.broadcast %cst_6 : f32 to vector<1x128xf32>
    %11 = arith.mulf %7, %10 : vector<1x128xf32>
    %12 = arith.mulf %9, %9 : vector<1x128xf32>
    %13 = arith.subf %11, %12 : vector<1x128xf32>
    %cst_7 = arith.constant 0.000000e+00 : f32
    %14 = vector.broadcast %cst_7 : f32 to vector<1x128xf32>
    %15 = arith.maximumf %13, %14 : vector<1x128xf32>
    %c0_8 = arith.constant 0 : index
    %c0_9 = arith.constant 0 : index
    %16 = vector.load %arg2[%c0_8, %c0_9] : memref<2x128xf32, #tpu.memory_space<vmem>>, vector<1x128xf32>
    %cst_10 = arith.constant 9.99999974E-6 : f32
    %17 = vector.broadcast %cst_10 : f32 to vector<1x128xf32>
    %18 = arith.addf %15, %17 : vector<1x128xf32>
    %19 = math.rsqrt %18 : vector<1x128xf32>
    %20 = arith.mulf %16, %19 : vector<1x128xf32>
    %c1 = arith.constant 1 : index
    %c0_11 = arith.constant 0 : index
    %21 = vector.load %arg2[%c1, %c0_11] : memref<2x128xf32, #tpu.memory_space<vmem>>, vector<1x128xf32>
    %22 = arith.mulf %9, %20 : vector<1x128xf32>
    %23 = arith.subf %21, %22 : vector<1x128xf32>
    %24 = vector.extract_strided_slice %2 {offsets = [0, 0], sizes = [104, 128], strides = [1, 1]} : vector<416x128xf32> to vector<104x128xf32>
    %25 = vector.broadcast %20 : vector<1x128xf32> to vector<104x128xf32>
    %26 = arith.mulf %24, %25 : vector<104x128xf32>
    %27 = vector.broadcast %23 : vector<1x128xf32> to vector<104x128xf32>
    %28 = arith.addf %26, %27 : vector<104x128xf32>
    %29 = vector.extract_strided_slice %2 {offsets = [104, 0], sizes = [104, 128], strides = [1, 1]} : vector<416x128xf32> to vector<104x128xf32>
    %30 = vector.broadcast %20 : vector<1x128xf32> to vector<104x128xf32>
    %31 = arith.mulf %29, %30 : vector<104x128xf32>
    %32 = vector.broadcast %23 : vector<1x128xf32> to vector<104x128xf32>
    %33 = arith.addf %31, %32 : vector<104x128xf32>
    %34 = vector.extract_strided_slice %2 {offsets = [208, 0], sizes = [104, 128], strides = [1, 1]} : vector<416x128xf32> to vector<104x128xf32>
    %35 = vector.broadcast %20 : vector<1x128xf32> to vector<104x128xf32>
    %36 = arith.mulf %34, %35 : vector<104x128xf32>
    %37 = vector.broadcast %23 : vector<1x128xf32> to vector<104x128xf32>
    %38 = arith.addf %36, %37 : vector<104x128xf32>
    %39 = vector.extract_strided_slice %2 {offsets = [312, 0], sizes = [104, 128], strides = [1, 1]} : vector<416x128xf32> to vector<104x128xf32>
    %40 = vector.broadcast %20 : vector<1x128xf32> to vector<104x128xf32>
    %41 = arith.mulf %39, %40 : vector<104x128xf32>
    %42 = vector.broadcast %23 : vector<1x128xf32> to vector<104x128xf32>
    %43 = arith.addf %41, %42 : vector<104x128xf32>
    %44 = arith.maximumf %28, %33 : vector<104x128xf32>
    %45 = arith.maximumf %38, %43 : vector<104x128xf32>
    %46 = arith.maximumf %44, %45 : vector<104x128xf32>
    %cst_12 = arith.constant 0.000000e+00 : f32
    %47 = vector.broadcast %cst_12 : f32 to vector<104x128xf32>
    %48 = arith.maximumf %46, %47 : vector<104x128xf32>
    %c0_13 = arith.constant 0 : index
    %c0_14 = arith.constant 0 : index
    %49 = vector.load %arg3[%c0_13, %c0_14] : memref<104x128xf32, #tpu.memory_space<vmem>>, vector<104x128xf32>
    tpu.vector_store %arg3[%c0_13, %c0_14], %48 {strides = array<i32>} : memref<104x128xf32, #tpu.memory_space<vmem>>, vector<104x128xf32>,
    return
  }
}

</mosaic_0001>

<llo_original>
// kernel: conv_feature_extractor.2
$region0: #{conv_feature_extractor.2}
  #allocation0 [shape = 'u32[]', space=smem, size = 0x4, offset = 0x4, fixed_abs, tag = 'smem constant byte address 0x4 - core index']
  #allocation1 [shape = 'u32[144,128]{1,0:T(1,128)}', space=vmem, size = 0x12000, scoped, tag = 'internal scratch']
  #allocation2 [shape = 'u32[2048]{0}', space=vmem, size = 0x2000, scoped, tag = 'scoped memory for conv_feature_extractor.2']
  #allocation3 [shape = 'u32[2048]{0}', space=vmem, size = 0x2000, scoped, tag = 'scoped memory for conv_feature_extractor.2']
  #allocation4 [shape = 'u32[2048]{0}', space=vmem, size = 0x2000, scoped, tag = 'scoped memory for conv_feature_extractor.2']
  #allocation5 [shape = 'u32[2048]{0}', space=vmem, size = 0x2000, scoped, tag = 'scoped memory for conv_feature_extractor.2']
  #allocation6 [shape = 'u32[2048]{0}', space=vmem, size = 0x2000, scoped, tag = 'scoped memory for conv_feature_extractor.2']
  #allocation7 [shape = 'u32[2048]{0}', space=vmem, size = 0x2000, scoped, tag = 'scoped memory for conv_feature_extractor.2']
  #allocation8 [shape = 'u32[2048]{0}', space=vmem, size = 0x2000, scoped, tag = 'scoped memory for conv_feature_extractor.2']
  #allocation9 [shape = 'u32[2048]{0}', space=vmem, size = 0x2000, scoped, tag = 'scoped memory for conv_feature_extractor.2']
  #allocation10 [shape = 'u32[2048]{0}', space=vmem, size = 0x2000, scoped, tag = 'scoped memory for conv_feature_extractor.2']
  #allocation11 [shape = 'u32[2048]{0}', space=vmem, size = 0x2000, scoped, tag = 'scoped memory for conv_feature_extractor.2']
  #allocation12 [shape = 'u32[2048]{0}', space=vmem, size = 0x2000, scoped, tag = 'scoped memory for conv_feature_extractor.2']
  #allocation13 [shape = 'u32[2048]{0}', space=vmem, size = 0x2000, scoped, tag = 'scoped memory for conv_feature_extractor.2']
  #allocation14 [shape = 'u32[2048]{0}', space=vmem, size = 0x2000, scoped, tag = 'scoped memory for conv_feature_extractor.2']
  #allocation15 [shape = 'u32[2048]{0}', space=vmem, size = 0x2000, scoped, tag = 'scoped memory for conv_feature_extractor.2']
  #allocation16 [shape = 'u32[2048]{0}', space=vmem, size = 0x2000, scoped, tag = 'scoped memory for conv_feature_extractor.2']
  %s0 = inlined_call_operand.vmem [shape: bf16[416,16], index: 0, kind: input, shape index: {}]
  %s1 = inlined_call_operand.vmem [shape: bf16[9,128], index: 1, kind: input, shape index: {}]
  %s2 = inlined_call_operand.<no memory space> [shape: bf16[], index: 2, kind: input, shape index: {}]
  %s3 = inlined_call_operand.vmem [shape: f32[1,128], index: 3, kind: input, shape index: {}]
  %s4 = inlined_call_operand.<no memory space> [shape: f32[], index: 4, kind: input, shape index: {}]
  %s5 = inlined_call_operand.vmem [shape: f32[1,128], index: 5, kind: input, shape index: {}]
  %s6 = inlined_call_operand.vmem [shape: f32[104,128], index: 6, kind: output, shape index: {}]
  %s7 = sld [smem:[#allocation0]]
  $region26: #{conv_feature_extractor.2} parent=0
    _
  %s9 = ssub.s32 1, %s7
  %s10 = scalar_select 0, %s9, %s7
  %v11 = vstv %s2
  %v12 = vunpack.i.l.bf16 %v11
  %v14 = vunpack.i.h.bf16 %v11
  %v16 = vstv %s4
  %v17 = vstv %s4
  $region1: #{conv_feature_extractor.2} parent=0
    #allocation17 [shape = 'u8[4096]{0}', space=vmem, size = 0x1000, dematerialized = true, scoped, tag = 'FusionAdapter Buffer %fusion.1 = bf16[16,128]{1,0:T(8,128)(2,1)} fusion(%param_1.5, %param_2.2), kind=kLoop, calls=%fused_computation.2.clone, metadata={op_name="jit(conv_feature_extractor)/jit(_pad)/pad" stack_frame_id=15}']
    #allocation18 [shape = 'u8[1024]{0}', space=vmem, size = 0x400, dematerialized = true, scoped, tag = 'FusionAdapter Buffer %fusion.2 = f32[2,128]{1,0:T(2,128)} fusion(%param_3.2, %param_4.2, %param_5.1), kind=kLoop, calls=%fused_computation.3.clone, metadata={op_name="jit(conv_feature_extractor)/concatenate" stack_frame_id=17}']
    // Predicated region
    $region2: #{conv_feature_extractor.2} parent=1 // pred_check
      _
    $region3: #{conv_feature_extractor.2} parent=1 // pred_check_branch
      %19 = sbr.rel (0) target = $region5
    $region4: #{conv_feature_extractor.2} parent=1 // pred_region
      _
    $region5: #{conv_feature_extractor.2} parent=1 // pred_fallthru
      _
    // Predicated region
    $region6: #{conv_feature_extractor.2} parent=1 // pred_check
      _
    $region7: #{conv_feature_extractor.2} parent=1 // pred_check_branch
      %21 = sbr.rel (0) target = $region9
    $region8: #{conv_feature_extractor.2} parent=1 // pred_region
      _
    $region9: #{conv_feature_extractor.2} parent=1 // pred_fallthru
      _
    // Predicated region
    $region10: #{conv_feature_extractor.2} parent=1 // pred_check
      _
    $region11: #{conv_feature_extractor.2} parent=1 // pred_check_branch
      %23 = sbr.rel (0) target = $region13
    $region12: #{conv_feature_extractor.2} parent=1 // pred_region
      %s25 = ssub.s32 1, 0
      %s26 = smul.u32 16, %s25
      %p27 = scmp.lt.s32.totalorder 0, 0
      %s28 = scalar_select %p27, 0, 0
      %s29 = scalar_lea.vmem %s3, %s28
      %s31 = ssub.s32 1, 0
      %s32 = smul.u32 16, %s31
    $region13: #{conv_feature_extractor.2} parent=1 // pred_fallthru
      _
    // Predicated region
    $region14: #{conv_feature_extractor.2} parent=1 // pred_check
      _
    $region15: #{conv_feature_extractor.2} parent=1 // pred_check_branch
      %34 = sbr.rel (0) target = $region17
    $region16: #{conv_feature_extractor.2} parent=1 // pred_region
      _
    $region17: #{conv_feature_extractor.2} parent=1 // pred_fallthru
      _
    %s36 = ssub.s32 1, 0
    %s37 = smul.u32 16, %s36
    %p38 = scmp.lt.s32.totalorder 0, 0
    %s39 = scalar_select %p38, 0, 0
    %s40 = scalar_lea.vmem %s3, %s39
    %s42 = ssub.s32 1, 0
    %s43 = smul.u32 16, %s42
    %p44 = scmp.lt.s32.totalorder 0, 0
    %s45 = scalar_select %p44, 0, 0
    %s46 = scalar_lea.vmem %s3, %s45
    %s48 = ssub.s32 1, 0
    %s49 = smul.u32 16, %s48
    %v50 = vld [vmem:[%s1] sm:$0xf]
    %v51 = vunpack.c.l.bf16 %v50
    %v52 = vunpack.c.h.bf16 %v50
    %v53 = vlaneseq
    %v54 = vshrl.u32 %v53, 7
    %vm56 = vcmp.lt.s32.totalorder %v54, 9
    %v57 = vsel %vm56, %v51, %v12
    %v58 = vpack.c.bf16 0.0, %v57
    %60 = vst [vmem:[#allocation17] sm:$0xf] %v58
    %s61 = scalar_lea.vmem %s1, 4
    %s63 = sor.u32 255, 127
    %s64 = sand.u32 %s63, 85
    %s65 = sshrl.u32 %s64, 1
    %s66 = sor.u32 %s64, %s65
    %s67 = sand.u32 51, %s66
    %s68 = sshrl.u32 %s67, 2
    %s69 = sor.u32 %s67, %s68
    %s70 = sand.u32 15, %s69
    %v71 = vld [vmem:[%s61] sm:%s70]
    %v72 = vunpack.c.l.bf16 %v71
    %v73 = vunpack.c.h.bf16 %v71
    %v74 = vlaneseq
    %v75 = vshrl.u32 %v74, 7
    %v76 = vadd.s32 %v75, 8
    %vm77 = vcmp.lt.s32.totalorder %v76, 9
    %v78 = vsel %vm77, %v72, %v12
    %s79 = scalar_lea.vmem [#allocation17], 4
    %v80 = vpack.c.bf16 0.0, %v78
    %82 = vst [vmem:[%s79] sm:$0xf] %v80
    %s83 = ssub.s32 0, 0
    %p84 = scmp.lt.s32.totalorder %s83, 0
    %s85 = scalar_select %p84, 0, 255
    %s86 = sand.u32 1, %s85
    %s87 = sand.u32 1, %s86
    %v88 = vld [vmem:[%s46] sm:%s87]
    %v89 = vlaneseq
    %v90 = vshrl.u32 %v89, 7
    %v91 = vadd.s32 %v90, 8
    %vm92 = vcmp.lt.s32.totalorder %v91, 9
    %v93 = vsel %vm92, %v88, %v16
    %vm94 = vcmask 1046528
    %v95 = vsel %vm94, %v93, %v16
    %v96 = vrot.slane %v95, 7
    %v97 = vld [vmem:[%s5] sm:$0x1]
    %v98 = vlaneseq
    %v99 = vshrl.u32 %v98, 7
    %vm101 = vcmp.lt.s32.totalorder %v99, 1
    %v102 = vsel %vm101, %v97, %v17
    %103 = xla_tuple %v102, %v96
    %104 = xla_tuple %103
    %v105 = vmax.f32 %v102, %v96
    %106 = xla_tuple %v105
    %108 = vst [vmem:[#allocation18] sm:$0x3] %v105
    %v110 = vld [vmem:[%s0] sm:$0xf]
    %v111 = vld [vmem:[%s0 + $0x4] sm:$0xf]
    %v112 = vld [vmem:[%s0 + $0x8] sm:$0xf]
    %v113 = vld [vmem:[%s0 + $0xc] sm:$0xf]
    %v114 = vld [vmem:[%s0 + $0x10] sm:$0xf]
    %v115 = vld [vmem:[%s0 + $0x14] sm:$0xf]
    %v116 = vld [vmem:[%s0 + $0x18] sm:$0xf]
    %v117 = vld [vmem:[%s0 + $0x1c] sm:$0xf]
    %v118 = vld [vmem:[%s0 + $0x20] sm:$0xf]
    %v119 = vld [vmem:[%s0 + $0x24] sm:$0xf]
    %v120 = vld [vmem:[%s0 + $0x28] sm:$0xf]
    %v121 = vld [vmem:[%s0 + $0x2c] sm:$0xf]
    %v122 = vld [vmem:[%s0 + $0x30] sm:$0xf]
    %v123 = vld [vmem:[%s0 + $0x34] sm:$0xf]
    %v124 = vld [vmem:[%s0 + $0x38] sm:$0xf]
    %v125 = vld [vmem:[%s0 + $0x3c] sm:$0xf]
    %v126 = vld [vmem:[%s0 + $0x40] sm:$0xf]
    %v127 = vld [vmem:[%s0 + $0x44] sm:$0xf]
    %v128 = vld [vmem:[%s0 + $0x48] sm:$0xf]
    %v129 = vld [vmem:[%s0 + $0x4c] sm:$0xf]
    %v130 = vld [vmem:[%s0 + $0x50] sm:$0xf]
    %v131 = vld [vmem:[%s0 + $0x54] sm:$0xf]
    %v132 = vld [vmem:[%s0 + $0x58] sm:$0xf]
    %v133 = vld [vmem:[%s0 + $0x5c] sm:$0xf]
    %v134 = vld [vmem:[%s0 + $0x60] sm:$0xf]
    %v135 = vld [vmem:[%s0 + $0x64] sm:$0xf]
    %v136 = vld [vmem:[%s0 + $0x68] sm:$0xf]
    %v137 = vld [vmem:[%s0 + $0x6c] sm:$0xf]
    %v138 = vld [vmem:[%s0 + $0x70] sm:$0xf]
    %v139 = vld [vmem:[%s0 + $0x74] sm:$0xf]
    %v140 = vld [vmem:[%s0 + $0x78] sm:$0xf]
    %v141 = vld [vmem:[%s0 + $0x7c] sm:$0xf]
    %v142 = vld [vmem:[%s0 + $0x80] sm:$0xf]
    %v143 = vld [vmem:[%s0 + $0x84] sm:$0xf]
    %v144 = vld [vmem:[%s0 + $0x88] sm:$0xf]
    %v145 = vld [vmem:[%s0 + $0x8c] sm:$0xf]
    %v146 = vld [vmem:[%s0 + $0x90] sm:$0xf]
    %v147 = vld [vmem:[%s0 + $0x94] sm:$0xf]
    %v148 = vld [vmem:[%s0 + $0x98] sm:$0xf]
    %v149 = vld [vmem:[%s0 + $0x9c] sm:$0xf]
    %v150 = vld [vmem:[%s0 + $0xa0] sm:$0xf]
    %v151 = vld [vmem:[%s0 + $0xa4] sm:$0xf]
    %v152 = vld [vmem:[%s0 + $0xa8] sm:$0xf]
    %v153 = vld [vmem:[%s0 + $0xac] sm:$0xf]
    %v154 = vld [vmem:[%s0 + $0xb0] sm:$0xf]
    %v155 = vld [vmem:[%s0 + $0xb4] sm:$0xf]
    %v156 = vld [vmem:[%s0 + $0xb8] sm:$0xf]
    %v157 = vld [vmem:[%s0 + $0xbc] sm:$0xf]
    %v158 = vld [vmem:[%s0 + $0xc0] sm:$0xf]
    %v159 = vld [vmem:[%s0 + $0xc4] sm:$0xf]
    %v160 = vld [vmem:[%s0 + $0xc8] sm:$0xf]
    %v161 = vld [vmem:[%s0 + $0xcc] sm:$0xf]
    %v162 = vld [vmem:[#allocation17] sm:$0xf]
    %v163 = vld [vmem:[#allocation17 + $0x4] sm:$0xf]
    %v216 = vunpack.c.l.b16 %v110
    %v217 = vunpack.c.l.b16 %v111
    %v218 = vunpack.c.l.b16 %v112
    %v219 = vunpack.c.l.b16 %v113
    %v220 = vunpack.c.l.b16 %v114
    %v221 = vunpack.c.l.b16 %v115
    %v222 = vunpack.c.l.b16 %v116
    %v223 = vunpack.c.l.b16 %v117
    %v224 = vunpack.c.l.b16 %v118
    %v225 = vunpack.c.l.b16 %v119
    %v226 = vunpack.c.l.b16 %v120
    %v227 = vunpack.c.l.b16 %v121
    %v228 = vunpack.c.l.b16 %v122
    %v229 = vunpack.c.l.b16 %v123
    %v230 = vunpack.c.l.b16 %v124
    %v231 = vunpack.c.l.b16 %v125
    %v232 = vunpack.c.l.b16 %v126
    %v233 = vunpack.c.l.b16 %v127
    %v234 = vunpack.c.l.b16 %v128
    %v235 = vunpack.c.l.b16 %v129
    %v236 = vunpack.c.l.b16 %v130
    %v237 = vunpack.c.l.b16 %v131
    %v238 = vunpack.c.l.b16 %v132
    %v239 = vunpack.c.l.b16 %v133
    %v240 = vunpack.c.l.b16 %v134
    %v241 = vunpack.c.l.b16 %v135
    %v242 = vunpack.c.l.b16 %v136
    %v243 = vunpack.c.l.b16 %v137
    %v244 = vunpack.c.l.b16 %v138
    %v245 = vunpack.c.l.b16 %v139
    %v246 = vunpack.c.l.b16 %v140
    %v247 = vunpack.c.l.b16 %v141
    %v248 = vunpack.c.l.b16 %v142
    %v249 = vunpack.c.l.b16 %v143
    %v250 = vunpack.c.l.b16 %v144
    %v251 = vunpack.c.l.b16 %v145
    %v252 = vunpack.c.l.b16 %v146
    %v253 = vunpack.c.l.b16 %v147
    %v254 = vunpack.c.l.b16 %v148
    %v255 = vunpack.c.l.b16 %v149
    %v256 = vunpack.c.l.b16 %v150
    %v257 = vunpack.c.l.b16 %v151
    %v258 = vunpack.c.l.b16 %v152
    %v259 = vunpack.c.l.b16 %v153
    %v260 = vunpack.c.l.b16 %v154
    %v261 = vunpack.c.l.b16 %v155
    %v262 = vunpack.c.l.b16 %v156
    %v263 = vunpack.c.l.b16 %v157
    %v264 = vunpack.c.l.b16 %v158
    %v265 = vunpack.c.l.b16 %v159
    %v266 = vunpack.c.l.b16 %v160
    %v267 = vunpack.c.l.b16 %v161
    %v268 = vpack.c.b16 %v217, %v216
    %v269 = vpack.c.b16 %v219, %v218
    %v270 = vpack.c.b16 %v221, %v220
    %v271 = vpack.c.b16 %v223, %v222
    %v272 = vpack.c.b16 %v225, %v224
    %v273 = vpack.c.b16 %v227, %v226
    %v274 = vpack.c.b16 %v229, %v228
    %v275 = vpack.c.b16 %v231, %v230
    %v276 = vpack.c.b16 %v233, %v232
    %v277 = vpack.c.b16 %v235, %v234
    %v278 = vpack.c.b16 %v237, %v236
    %v279 = vpack.c.b16 %v239, %v238
    %v280 = vpack.c.b16 %v241, %v240
    %v281 = vpack.c.b16 %v243, %v242
    %v282 = vpack.c.b16 %v245, %v244
    %v283 = vpack.c.b16 %v247, %v246
    %v284 = vpack.c.b16 %v249, %v248
    %v285 = vpack.c.b16 %v251, %v250
    %v286 = vpack.c.b16 %v253, %v252
    %v287 = vpack.c.b16 %v255, %v254
    %v288 = vpack.c.b16 %v257, %v256
    %v289 = vpack.c.b16 %v259, %v258
    %v290 = vpack.c.b16 %v261, %v260
    %v291 = vpack.c.b16 %v263, %v262
    %v292 = vpack.c.b16 %v265, %v264
    %v293 = vpack.c.b16 %v267, %v266
    %v296 = vunpack.c.l.b16 %v162
    %v297 = vunpack.c.l.b16 %v163
    %v298 = vpack.c.b16 %v297, %v296
    %vm300 = vcmask 130048
    %v302 = vsel %vm300, %v268, 0
    %v305 = vsel %vm300, %v269, 0
    %v308 = vsel %vm300, %v270, 0
    %v311 = vsel %vm300, %v271, 0
    %v314 = vsel %vm300, %v272, 0
    %v317 = vsel %vm300, %v273, 0
    %v320 = vsel %vm300, %v274, 0
    %v323 = vsel %vm300, %v275, 0
    %v326 = vsel %vm300, %v276, 0
    %v329 = vsel %vm300, %v277, 0
    %v332 = vsel %vm300, %v278, 0
    %v335 = vsel %vm300, %v279, 0
    %v338 = vsel %vm300, %v280, 0
    %v341 = vsel %vm300, %v281, 0
    %v344 = vsel %vm300, %v282, 0
    %v347 = vsel %vm300, %v283, 0
    %v350 = vsel %vm300, %v284, 0
    %v353 = vsel %vm300, %v285, 0
    %v356 = vsel %vm300, %v286, 0
    %v359 = vsel %vm300, %v287, 0
    %v362 = vsel %vm300, %v288, 0
    %v365 = vsel %vm300, %v289, 0
    %v368 = vsel %vm300, %v290, 0
    %v371 = vsel %vm300, %v291, 0
    %v374 = vsel %vm300, %v292, 0
    %v377 = vsel %vm300, %v293, 0
    %379 = vmatprep.subr.bf16.mxu0 0
    %380 = vmatpush1.bf16.msra.mxu0 %v298
    %381 = vmatprep.subr.bf16.mxu0 0
    %382 = vmatpush1.bf16.msra.mxu0 0
    %383 = vmatprep.subr.bf16.mxu0 0
    %384 = vmatpush1.bf16.msra.mxu0 0
    %385 = vmatprep.subr.bf16.mxu0 0
    %386 = vmatpush1.bf16.msra.mxu0 0
    %387 = vmatprep.subr.bf16.mxu0 0
    %388 = vmatpush1.bf16.msra.mxu0 0
    %389 = vmatprep.subr.bf16.mxu0 0
    %390 = vmatpush1.bf16.msra.mxu0 0
    %391 = vmatprep.subr.bf16.mxu0 0
    %392 = vmatpush1.bf16.msra.mxu0 0
    %393 = vmatprep.subr.bf16.mxu0 0
    %394 = vmatpush1.bf16.msra.mxu0 0
    %395 = vmatprep.subr.bf16.mxu0 0
    %396 = vmatpush1.bf16.msra.mxu0 0
    %397 = vmatprep.subr.bf16.mxu0 0
    %398 = vmatpush1.bf16.msra.mxu0 0
    %399 = vmatprep.subr.bf16.mxu0 0
    %400 = vmatpush1.bf16.msra.mxu0 0
    %401 = vmatprep.subr.bf16.mxu0 0
    %402 = vmatpush1.bf16.msra.mxu0 0
    %403 = vmatprep.subr.bf16.mxu0 0
    %404 = vmatpush1.bf16.msra.mxu0 0
    %405 = vmatprep.subr.bf16.mxu0 0
    %406 = vmatpush1.bf16.msra.mxu0 0
    %407 = vmatprep.subr.bf16.mxu0 0
    %408 = vmatpush1.bf16.msra.mxu0 0
    %409 = vmatprep.subr.bf16.mxu0 0
    %410 = vmatpush1.bf16.msra.mxu0 0
    %411 = vmatprep.mubr.bf16.mxu0 0
    %412 = vmatmul.mubr.bf16.gmra.mrb[0].mxu0 %v302
    %v413 = vpop.f32.mrb[0].mxu0
    %v414 = vadd.f32 0.0, %v413
    %v415 = vpop.f32.mrb[0].mxu0
    %v416 = vpop.f32.mrb[0].mxu0
    %v417 = vadd.f32 0.0, %v416
    %v418 = vpop.f32.mrb[0].mxu0
    %419 = vmatprep.mubr.bf16.mxu0 0
    %420 = vmatmul.mubr.bf16.gmra.mrb[0].mxu0 %v305
    %v421 = vpop.f32.mrb[0].mxu0
    %v422 = vadd.f32 0.0, %v421
    %v423 = vpop.f32.mrb[0].mxu0
    %v424 = vpop.f32.mrb[0].mxu0
    %v425 = vadd.f32 0.0, %v424
    %v426 = vpop.f32.mrb[0].mxu0
    %427 = vmatprep.mubr.bf16.mxu0 0
    %428 = vmatmul.mubr.bf16.gmra.mrb[0].mxu0 %v308
    %v429 = vpop.f32.mrb[0].mxu0
    %v430 = vadd.f32 0.0, %v429
    %v431 = vpop.f32.mrb[0].mxu0
    %v432 = vpop.f32.mrb[0].mxu0
    %v433 = vadd.f32 0.0, %v432
    %v434 = vpop.f32.mrb[0].mxu0
    %435 = vmatprep.mubr.bf16.mxu0 0
    %436 = vmatmul.mubr.bf16.gmra.mrb[0].mxu0 %v311
    %v437 = vpop.f32.mrb[0].mxu0
    %v438 = vadd.f32 0.0, %v437
    %v439 = vpop.f32.mrb[0].mxu0
    %v440 = vpop.f32.mrb[0].mxu0
    %v441 = vadd.f32 0.0, %v440
    %v442 = vpop.f32.mrb[0].mxu0
    %443 = vmatprep.mubr.bf16.mxu0 0
    %444 = vmatmul.mubr.bf16.gmra.mrb[0].mxu0 %v314
    %v445 = vpop.f32.mrb[0].mxu0
    %v446 = vadd.f32 0.0, %v445
    %v447 = vpop.f32.mrb[0].mxu0
    %v448 = vpop.f32.mrb[0].mxu0
    %v449 = vadd.f32 0.0, %v448
    %v450 = vpop.f32.mrb[0].mxu0
    %451 = vmatprep.mubr.bf16.mxu0 0
    %452 = vmatmul.mubr.bf16.gmra.mrb[0].mxu0 %v317
    %v453 = vpop.f32.mrb[0].mxu0
    %v454 = vadd.f32 0.0, %v453
    %v455 = vpop.f32.mrb[0].mxu0
    %v456 = vpop.f32.mrb[0].mxu0
    %v457 = vadd.f32 0.0, %v456
    %v458 = vpop.f32.mrb[0].mxu0
    %459 = vmatprep.mubr.bf16.mxu0 0
    %460 = vmatmul.mubr.bf16.gmra.mrb[0].mxu0 %v320
    %v461 = vpop.f32.mrb[0].mxu0
    %v462 = vadd.f32 0.0, %v461
    %v463 = vpop.f32.mrb[0].mxu0
    %v464 = vpop.f32.mrb[0].mxu0
    %v465 = vadd.f32 0.0, %v464
    %v466 = vpop.f32.mrb[0].mxu0
    %467 = vmatprep.mubr.bf16.mxu0 0
    %468 = vmatmul.mubr.bf16.gmra.mrb[0].mxu0 %v323
    %v469 = vpop.f32.mrb[0].mxu0
    %v470 = vadd.f32 0.0, %v469
    %v471 = vpop.f32.mrb[0].mxu0
    %v472 = vpop.f32.mrb[0].mxu0
    %v473 = vadd.f32 0.0, %v472
    %v474 = vpop.f32.mrb[0].mxu0
    %475 = vmatprep.mubr.bf16.mxu0 0
    %476 = vmatmul.mubr.bf16.gmra.mrb[0].mxu0 %v326
    %v477 = vpop.f32.mrb[0].mxu0
    %v478 = vadd.f32 0.0, %v477
    %v479 = vpop.f32.mrb[0].mxu0
    %v480 = vpop.f32.mrb[0].mxu0
    %v481 = vadd.f32 0.0, %v480
    %v482 = vpop.f32.mrb[0].mxu0
    %483 = vmatprep.mubr.bf16.mxu0 0
    %484 = vmatmul.mubr.bf16.gmra.mrb[0].mxu0 %v329
    %v485 = vpop.f32.mrb[0].mxu0
    %v486 = vadd.f32 0.0, %v485
    %v487 = vpop.f32.mrb[0].mxu0
    %v488 = vpop.f32.mrb[0].mxu0
    %v489 = vadd.f32 0.0, %v488
    %v490 = vpop.f32.mrb[0].mxu0
    %491 = vmatprep.mubr.bf16.mxu0 0
    %492 = vmatmul.mubr.bf16.gmra.mrb[0].mxu0 %v332
    %v493 = vpop.f32.mrb[0].mxu0
    %v494 = vadd.f32 0.0, %v493
    %v495 = vpop.f32.mrb[0].mxu0
    %v496 = vpop.f32.mrb[0].mxu0
    %v497 = vadd.f32 0.0, %v496
    %v498 = vpop.f32.mrb[0].mxu0
    %499 = vmatprep.mubr.bf16.mxu0 0
    %500 = vmatmul.mubr.bf16.gmra.mrb[0].mxu0 %v335
    %v501 = vpop.f32.mrb[0].mxu0
    %v502 = vadd.f32 0.0, %v501
    %v503 = vpop.f32.mrb[0].mxu0
    %v504 = vpop.f32.mrb[0].mxu0
    %v505 = vadd.f32 0.0, %v504
    %v506 = vpop.f32.mrb[0].mxu0
    %507 = vmatprep.mubr.bf16.mxu0 0
    %508 = vmatmul.mubr.bf16.gmra.mrb[0].mxu0 %v338
    %v509 = vpop.f32.mrb[0].mxu0
    %v510 = vadd.f32 0.0, %v509
    %v511 = vpop.f32.mrb[0].mxu0
    %v512 = vpop.f32.mrb[0].mxu0
    %v513 = vadd.f32 0.0, %v512
    %v514 = vpop.f32.mrb[0].mxu0
    %515 = vmatprep.mubr.bf16.mxu0 0
    %516 = vmatmul.mubr.bf16.gmra.mrb[0].mxu0 %v341
    %v517 = vpop.f32.mrb[0].mxu0
    %v518 = vadd.f32 0.0, %v517
    %v519 = vpop.f32.mrb[0].mxu0
    %v520 = vpop.f32.mrb[0].mxu0
    %v521 = vadd.f32 0.0, %v520
    %v522 = vpop.f32.mrb[0].mxu0
    %523 = vmatprep.mubr.bf16.mxu0 0
    %524 = vmatmul.mubr.bf16.gmra.mrb[0].mxu0 %v344
    %v525 = vpop.f32.mrb[0].mxu0
    %v526 = vadd.f32 0.0, %v525
    %v527 = vpop.f32.mrb[0].mxu0
    %v528 = vpop.f32.mrb[0].mxu0
    %v529 = vadd.f32 0.0, %v528
    %v530 = vpop.f32.mrb[0].mxu0
    %531 = vmatprep.mubr.bf16.mxu0 0
    %532 = vmatmul.mubr.bf16.gmra.mrb[0].mxu0 %v347
    %v533 = vpop.f32.mrb[0].mxu0
    %v534 = vadd.f32 0.0, %v533
    %v535 = vpop.f32.mrb[0].mxu0
    %v536 = vpop.f32.mrb[0].mxu0
    %v537 = vadd.f32 0.0, %v536
    %v538 = vpop.f32.mrb[0].mxu0
    %539 = vmatprep.mubr.bf16.mxu0 0
    %540 = vmatmul.mubr.bf16.gmra.mrb[0].mxu0 %v350
    %v541 = vpop.f32.mrb[0].mxu0
    %v542 = vadd.f32 0.0, %v541
    %v543 = vpop.f32.mrb[0].mxu0
    %v544 = vpop.f32.mrb[0].mxu0
    %v545 = vadd.f32 0.0, %v544
    %v546 = vpop.f32.mrb[0].mxu0
    %547 = vmatprep.mubr.bf16.mxu0 0
    %548 = vmatmul.mubr.bf16.gmra.mrb[0].mxu0 %v353
    %v549 = vpop.f32.mrb[0].mxu0
    %v550 = vadd.f32 0.0, %v549
    %v551 = vpop.f32.mrb[0].mxu0
    %v552 = vpop.f32.mrb[0].mxu0
    %v553 = vadd.f32 0.0, %v552
    %v554 = vpop.f32.mrb[0].mxu0
    %555 = vmatprep.mubr.bf16.mxu0 0
    %556 = vmatmul.mubr.bf16.gmra.mrb[0].mxu0 %v356
    %v557 = vpop.f32.mrb[0].mxu0
    %v558 = vadd.f32 0.0, %v557
    %v559 = vpop.f32.mrb[0].mxu0
    %v560 = vpop.f32.mrb[0].mxu0
    %v561 = vadd.f32 0.0, %v560
    %v562 = vpop.f32.mrb[0].mxu0
    %563 = vmatprep.mubr.bf16.mxu0 0
    %564 = vmatmul.mubr.bf16.gmra.mrb[0].mxu0 %v359
    %v565 = vpop.f32.mrb[0].mxu0
    %v566 = vadd.f32 0.0, %v565
    %v567 = vpop.f32.mrb[0].mxu0
    %v568 = vpop.f32.mrb[0].mxu0
    %v569 = vadd.f32 0.0, %v568
    %v570 = vpop.f32.mrb[0].mxu0
    %571 = vmatprep.mubr.bf16.mxu0 0
    %572 = vmatmul.mubr.bf16.gmra.mrb[0].mxu0 %v362
    %v573 = vpop.f32.mrb[0].mxu0
    %v574 = vadd.f32 0.0, %v573
    %v575 = vpop.f32.mrb[0].mxu0
    %v576 = vpop.f32.mrb[0].mxu0
    %v577 = vadd.f32 0.0, %v576
    %v578 = vpop.f32.mrb[0].mxu0
    %579 = vmatprep.mubr.bf16.mxu0 0
    %580 = vmatmul.mubr.bf16.gmra.mrb[0].mxu0 %v365
    %v581 = vpop.f32.mrb[0].mxu0
    %v582 = vadd.f32 0.0, %v581
    %v583 = vpop.f32.mrb[0].mxu0
    %v584 = vpop.f32.mrb[0].mxu0
    %v585 = vadd.f32 0.0, %v584
    %v586 = vpop.f32.mrb[0].mxu0
    %587 = vmatprep.mubr.bf16.mxu0 0
    %588 = vmatmul.mubr.bf16.gmra.mrb[0].mxu0 %v368
    %v589 = vpop.f32.mrb[0].mxu0
    %v590 = vadd.f32 0.0, %v589
    %v591 = vpop.f32.mrb[0].mxu0
    %v592 = vpop.f32.mrb[0].mxu0
    %v593 = vadd.f32 0.0, %v592
    %v594 = vpop.f32.mrb[0].mxu0
    %595 = vmatprep.mubr.bf16.mxu0 0
    %596 = vmatmul.mubr.bf16.gmra.mrb[0].mxu0 %v371
    %v597 = vpop.f32.mrb[0].mxu0
    %v598 = vadd.f32 0.0, %v597
    %v599 = vpop.f32.mrb[0].mxu0
    %v600 = vpop.f32.mrb[0].mxu0
    %v601 = vadd.f32 0.0, %v600
    %v602 = vpop.f32.mrb[0].mxu0
    %603 = vmatprep.mubr.bf16.mxu0 0
    %604 = vmatmul.mubr.bf16.gmra.mrb[0].mxu0 %v374
    %v605 = vpop.f32.mrb[0].mxu0
    %v606 = vadd.f32 0.0, %v605
    %v607 = vpop.f32.mrb[0].mxu0
    %v608 = vpop.f32.mrb[0].mxu0
    %v609 = vadd.f32 0.0, %v608
    %v610 = vpop.f32.mrb[0].mxu0
    %611 = vmatprep.mubr.bf16.mxu0 0
    %612 = vmatmul.mubr.bf16.gmra.mrb[0].mxu0 %v377
    %v613 = vpop.f32.mrb[0].mxu0
    %v614 = vadd.f32 0.0, %v613
    %v615 = vpop.f32.mrb[0].mxu0
    %v616 = vpop.f32.mrb[0].mxu0
    %v617 = vadd.f32 0.0, %v616
    %v618 = vpop.f32.mrb[0].mxu0
    %619 = vdwg.mxu0
    %v620 = vadd.f32 %v414, %v417
    %v621 = vadd.f32 %v620, %v422
    %v622 = vadd.f32 %v621, %v425
    %v623 = vadd.f32 %v622, %v430
    %v624 = vadd.f32 %v623, %v433
    %v625 = vadd.f32 %v624, %v438
    %v626 = vadd.f32 %v625, %v441
    %v627 = vadd.f32 %v626, %v446
    %v628 = vadd.f32 %v627, %v449
    %v629 = vadd.f32 %v628, %v454
    %v630 = vadd.f32 %v629, %v457
    %v631 = vadd.f32 %v630, %v462
    %v632 = vadd.f32 %v631, %v465
    %v633 = vadd.f32 %v632, %v470
    %v634 = vadd.f32 %v633, %v473
    %v635 = vadd.f32 %v634, %v478
    %v636 = vadd.f32 %v635, %v481
    %v637 = vadd.f32 %v636, %v486
    %v638 = vadd.f32 %v637, %v489
    %v639 = vadd.f32 %v638, %v494
    %v640 = vadd.f32 %v639, %v497
    %v641 = vadd.f32 %v640, %v502
    %v642 = vadd.f32 %v641, %v505
    %v643 = vadd.f32 %v642, %v510
    %v644 = vadd.f32 %v643, %v513
    %v645 = vadd.f32 %v644, %v518
    %v646 = vadd.f32 %v645, %v521
    %v647 = vadd.f32 %v646, %v526
    %v648 = vadd.f32 %v647, %v529
    %v649 = vadd.f32 %v648, %v534
    %v650 = vadd.f32 %v649, %v537
    %v651 = vadd.f32 %v650, %v542
    %v652 = vadd.f32 %v651, %v545
    %v653 = vadd.f32 %v652, %v550
    %v654 = vadd.f32 %v653, %v553
    %v655 = vadd.f32 %v654, %v558
    %v656 = vadd.f32 %v655, %v561
    %v657 = vadd.f32 %v656, %v566
    %v658 = vadd.f32 %v657, %v569
    %v659 = vadd.f32 %v658, %v574
    %v660 = vadd.f32 %v659, %v577
    %v661 = vadd.f32 %v660, %v582
    %v662 = vadd.f32 %v661, %v585
    %v663 = vadd.f32 %v662, %v590
    %v664 = vadd.f32 %v663, %v593
    %v665 = vadd.f32 %v664, %v598
    %v666 = vadd.f32 %v665, %v601
    %v667 = vadd.f32 %v666, %v606
    %v668 = vadd.f32 %v667, %v609
    %v669 = vadd.f32 %v668, %v614
    %v670 = vadd.f32 %v669, %v617
    %v671 = vrot.slane %v670, 4
    %v672 = vadd.f32 %v670, %v671
    %v673 = vrot.slane %v672, 2
    %v674 = vadd.f32 %v672, %v673
    %v675 = vrot.slane %v674, 1
    %v676 = vadd.f32 %v674, %v675
    %v677 = vmul.f32 %v414, %v414
    %v678 = vmul.f32 %v417, %v417
    %v679 = vmul.f32 %v422, %v422
    %v680 = vmul.f32 %v425, %v425
    %v681 = vmul.f32 %v430, %v430
    %v682 = vmul.f32 %v433, %v433
    %v683 = vmul.f32 %v438, %v438
    %v684 = vmul.f32 %v441, %v441
    %v685 = vmul.f32 %v446, %v446
    %v686 = vmul.f32 %v449, %v449
    %v687 = vmul.f32 %v454, %v454
    %v688 = vmul.f32 %v457, %v457
    %v689 = vmul.f32 %v462, %v462
    %v690 = vmul.f32 %v465, %v465
    %v691 = vmul.f32 %v470, %v470
    %v692 = vmul.f32 %v473, %v473
    %v693 = vmul.f32 %v478, %v478
    %v694 = vmul.f32 %v481, %v481
    %v695 = vmul.f32 %v486, %v486
    %v696 = vmul.f32 %v489, %v489
    %v697 = vmul.f32 %v494, %v494
    %v698 = vmul.f32 %v497, %v497
    %v699 = vmul.f32 %v502, %v502
    %v700 = vmul.f32 %v505, %v505
    %v701 = vmul.f32 %v510, %v510
    %v702 = vmul.f32 %v513, %v513
    %v703 = vmul.f32 %v518, %v518
    %v704 = vmul.f32 %v521, %v521
    %v705 = vmul.f32 %v526, %v526
    %v706 = vmul.f32 %v529, %v529
    %v707 = vmul.f32 %v534, %v534
    %v708 = vmul.f32 %v537, %v537
    %v709 = vmul.f32 %v542, %v542
    %v710 = vmul.f32 %v545, %v545
    %v711 = vmul.f32 %v550, %v550
    %v712 = vmul.f32 %v553, %v553
    %v713 = vmul.f32 %v558, %v558
    %v714 = vmul.f32 %v561, %v561
    %v715 = vmul.f32 %v566, %v566
    %v716 = vmul.f32 %v569, %v569
    %v717 = vmul.f32 %v574, %v574
    %v718 = vmul.f32 %v577, %v577
    %v719 = vmul.f32 %v582, %v582
    %v720 = vmul.f32 %v585, %v585
    %v721 = vmul.f32 %v590, %v590
    %v722 = vmul.f32 %v593, %v593
    %v723 = vmul.f32 %v598, %v598
    %v724 = vmul.f32 %v601, %v601
    %v725 = vmul.f32 %v606, %v606
    %v726 = vmul.f32 %v609, %v609
    %v727 = vmul.f32 %v614, %v614
    %v728 = vmul.f32 %v617, %v617
    %v729 = vadd.f32 %v677, %v678
    %v730 = vadd.f32 %v729, %v679
    %v731 = vadd.f32 %v730, %v680
    %v732 = vadd.f32 %v731, %v681
    %v733 = vadd.f32 %v732, %v682
    %v734 = vadd.f32 %v733, %v683
    %v735 = vadd.f32 %v734, %v684
    %v736 = vadd.f32 %v735, %v685
    %v737 = vadd.f32 %v736, %v686
    %v738 = vadd.f32 %v737, %v687
    %v739 = vadd.f32 %v738, %v688
    %v740 = vadd.f32 %v739, %v689
    %v741 = vadd.f32 %v740, %v690
    %v742 = vadd.f32 %v741, %v691
    %v743 = vadd.f32 %v742, %v692
    %v744 = vadd.f32 %v743, %v693
    %v745 = vadd.f32 %v744, %v694
    %v746 = vadd.f32 %v745, %v695
    %v747 = vadd.f32 %v746, %v696
    %v748 = vadd.f32 %v747, %v697
    %v749 = vadd.f32 %v748, %v698
    %v750 = vadd.f32 %v749, %v699
    %v751 = vadd.f32 %v750, %v700
    %v752 = vadd.f32 %v751, %v701
    %v753 = vadd.f32 %v752, %v702
    %v754 = vadd.f32 %v753, %v703
    %v755 = vadd.f32 %v754, %v704
    %v756 = vadd.f32 %v755, %v705
    %v757 = vadd.f32 %v756, %v706
    %v758 = vadd.f32 %v757, %v707
    %v759 = vadd.f32 %v758, %v708
    %v760 = vadd.f32 %v759, %v709
    %v761 = vadd.f32 %v760, %v710
    %v762 = vadd.f32 %v761, %v711
    %v763 = vadd.f32 %v762, %v712
    %v764 = vadd.f32 %v763, %v713
    %v765 = vadd.f32 %v764, %v714
    %v766 = vadd.f32 %v765, %v715
    %v767 = vadd.f32 %v766, %v716
    %v768 = vadd.f32 %v767, %v717
    %v769 = vadd.f32 %v768, %v718
    %v770 = vadd.f32 %v769, %v719
    %v771 = vadd.f32 %v770, %v720
    %v772 = vadd.f32 %v771, %v721
    %v773 = vadd.f32 %v772, %v722
    %v774 = vadd.f32 %v773, %v723
    %v775 = vadd.f32 %v774, %v724
    %v776 = vadd.f32 %v775, %v725
    %v777 = vadd.f32 %v776, %v726
    %v778 = vadd.f32 %v777, %v727
    %v779 = vadd.f32 %v778, %v728
    %v780 = vrot.slane %v779, 4
    %v781 = vadd.f32 %v779, %v780
    %v782 = vrot.slane %v781, 2
    %v783 = vadd.f32 %v781, %v782
    %v784 = vrot.slane %v783, 1
    %v785 = vadd.f32 %v783, %v784
    %v786 = vmul.f32 %v676, 0.0025510204
    %v787 = vmul.f32 %v785, 0.0025510204
    %v788 = vmul.f32 %v786, %v786
    %v789 = vsub.f32 %v787, %v788
    %v790 = vmax.f32 %v789, 0.0
    %v791 = vld [vmem:[#allocation18] sm:$0x1]
    %v792 = vadd.f32 %v790, 1e-05
    %v793 = vrsqrt.pop %v792
    %v794 = vmul.f32 %v791, %v793
    %v795 = vld [vmem:[#allocation18 + $0x1] sm:$0x1]
    %v796 = vmul.f32 %v786, %v794
    %v797 = vsub.f32 %v795, %v796
    %v798 = vlaneseq
    %v799 = vshrl.u32 %v798, 7
    %v800 = vsub.s32 0, %v799
    %v801 = vrot.slane %v794, %v800
    %v802 = vmul.f32 %v414, %v801
    %v803 = vmul.f32 %v417, %v801
    %v804 = vmul.f32 %v422, %v801
    %v805 = vmul.f32 %v425, %v801
    %v806 = vmul.f32 %v430, %v801
    %v807 = vmul.f32 %v433, %v801
    %v808 = vmul.f32 %v438, %v801
    %v809 = vmul.f32 %v441, %v801
    %v810 = vmul.f32 %v446, %v801
    %v811 = vmul.f32 %v449, %v801
    %v812 = vmul.f32 %v454, %v801
    %v813 = vmul.f32 %v457, %v801
    %v814 = vmul.f32 %v462, %v801
    %v815 = vlaneseq
    %v816 = vshrl.u32 %v815, 7
    %v817 = vsub.s32 0, %v816
    %v818 = vrot.slane %v797, %v817
    %v819 = vadd.f32 %v802, %v818
    %v820 = vadd.f32 %v803, %v818
    %v821 = vadd.f32 %v804, %v818
    %v822 = vadd.f32 %v805, %v818
    %v823 = vadd.f32 %v806, %v818
    %v824 = vadd.f32 %v807, %v818
    %v825 = vadd.f32 %v808, %v818
    %v826 = vadd.f32 %v809, %v818
    %v827 = vadd.f32 %v810, %v818
    %v828 = vadd.f32 %v811, %v818
    %v829 = vadd.f32 %v812, %v818
    %v830 = vadd.f32 %v813, %v818
    %v831 = vadd.f32 %v814, %v818
    %v832 = vmul.f32 %v465, %v801
    %v833 = vmul.f32 %v470, %v801
    %v834 = vmul.f32 %v473, %v801
    %v835 = vmul.f32 %v478, %v801
    %v836 = vmul.f32 %v481, %v801
    %v837 = vmul.f32 %v486, %v801
    %v838 = vmul.f32 %v489, %v801
    %v839 = vmul.f32 %v494, %v801
    %v840 = vmul.f32 %v497, %v801
    %v841 = vmul.f32 %v502, %v801
    %v842 = vmul.f32 %v505, %v801
    %v843 = vmul.f32 %v510, %v801
    %v844 = vmul.f32 %v513, %v801
    %v845 = vadd.f32 %v832, %v818
    %v846 = vadd.f32 %v833, %v818
    %v847 = vadd.f32 %v834, %v818
    %v848 = vadd.f32 %v835, %v818
    %v849 = vadd.f32 %v836, %v818
    %v850 = vadd.f32 %v837, %v818
    %v851 = vadd.f32 %v838, %v818
    %v852 = vadd.f32 %v839, %v818
    %v853 = vadd.f32 %v840, %v818
    %v854 = vadd.f32 %v841, %v818
    %v855 = vadd.f32 %v842, %v818
    %v856 = vadd.f32 %v843, %v818
    %v857 = vadd.f32 %v844, %v818
    %v858 = vmul.f32 %v518, %v801
    %v859 = vmul.f32 %v521, %v801
    %v860 = vmul.f32 %v526, %v801
    %v861 = vmul.f32 %v529, %v801
    %v862 = vmul.f32 %v534, %v801
    %v863 = vmul.f32 %v537, %v801
    %v864 = vmul.f32 %v542, %v801
    %v865 = vmul.f32 %v545, %v801
    %v866 = vmul.f32 %v550, %v801
    %v867 = vmul.f32 %v553, %v801
    %v868 = vmul.f32 %v558, %v801
    %v869 = vmul.f32 %v561, %v801
    %v870 = vmul.f32 %v566, %v801
    %v871 = vadd.f32 %v858, %v818
    %v872 = vadd.f32 %v859, %v818
    %v873 = vadd.f32 %v860, %v818
    %v874 = vadd.f32 %v861, %v818
    %v875 = vadd.f32 %v862, %v818
    %v876 = vadd.f32 %v863, %v818
    %v877 = vadd.f32 %v864, %v818
    %v878 = vadd.f32 %v865, %v818
    %v879 = vadd.f32 %v866, %v818
    %v880 = vadd.f32 %v867, %v818
    %v881 = vadd.f32 %v868, %v818
    %v882 = vadd.f32 %v869, %v818
    %v883 = vadd.f32 %v870, %v818
    %v884 = vmul.f32 %v569, %v801
    %v885 = vmul.f32 %v574, %v801
    %v886 = vmul.f32 %v577, %v801
    %v887 = vmul.f32 %v582, %v801
    %v888 = vmul.f32 %v585, %v801
    %v889 = vmul.f32 %v590, %v801
    %v890 = vmul.f32 %v593, %v801
    %v891 = vmul.f32 %v598, %v801
    %v892 = vmul.f32 %v601, %v801
    %v893 = vmul.f32 %v606, %v801
    %v894 = vmul.f32 %v609, %v801
    %v895 = vmul.f32 %v614, %v801
    %v896 = vmul.f32 %v617, %v801
    %v897 = vadd.f32 %v884, %v818
    %v898 = vadd.f32 %v885, %v818
    %v899 = vadd.f32 %v886, %v818
    %v900 = vadd.f32 %v887, %v818
    %v901 = vadd.f32 %v888, %v818
    %v902 = vadd.f32 %v889, %v818
    %v903 = vadd.f32 %v890, %v818
    %v904 = vadd.f32 %v891, %v818
    %v905 = vadd.f32 %v892, %v818
    %v906 = vadd.f32 %v893, %v818
    %v907 = vadd.f32 %v894, %v818
    %v908 = vadd.f32 %v895, %v818
    %v909 = vadd.f32 %v896, %v818
    %v910 = vmax.f32 %v819, %v845
    %v911 = vmax.f32 %v820, %v846
    %v912 = vmax.f32 %v821, %v847
    %v913 = vmax.f32 %v822, %v848
    %v914 = vmax.f32 %v823, %v849
    %v915 = vmax.f32 %v824, %v850
    %v916 = vmax.f32 %v825, %v851
    %v917 = vmax.f32 %v826, %v852
    %v918 = vmax.f32 %v827, %v853
    %v919 = vmax.f32 %v828, %v854
    %v920 = vmax.f32 %v829, %v855
    %v921 = vmax.f32 %v830, %v856
    %v922 = vmax.f32 %v831, %v857
    %v923 = vmax.f32 %v871, %v897
    %v924 = vmax.f32 %v872, %v898
    %v925 = vmax.f32 %v873, %v899
    %v926 = vmax.f32 %v874, %v900
    %v927 = vmax.f32 %v875, %v901
    %v928 = vmax.f32 %v876, %v902
    %v929 = vmax.f32 %v877, %v903
    %v930 = vmax.f32 %v878, %v904
    %v931 = vmax.f32 %v879, %v905
    %v932 = vmax.f32 %v880, %v906
    %v933 = vmax.f32 %v881, %v907
    %v934 = vmax.f32 %v882, %v908
    %v935 = vmax.f32 %v883, %v909
    %v936 = vmax.f32 %v910, %v923
    %v937 = vmax.f32 %v911, %v924
    %v938 = vmax.f32 %v912, %v925
    %v939 = vmax.f32 %v913, %v926
    %v940 = vmax.f32 %v914, %v927
    %v941 = vmax.f32 %v915, %v928
    %v942 = vmax.f32 %v916, %v929
    %v943 = vmax.f32 %v917, %v930
    %v944 = vmax.f32 %v918, %v931
    %v945 = vmax.f32 %v919, %v932
    %v946 = vmax.f32 %v920, %v933
    %v947 = vmax.f32 %v921, %v934
    %v948 = vmax.f32 %v922, %v935
    %v949 = vmax.f32 %v936, 0.0
    %v950 = vmax.f32 %v937, 0.0
    %v951 = vmax.f32 %v938, 0.0
    %v952 = vmax.f32 %v939, 0.0
    %v953 = vmax.f32 %v940, 0.0
    %v954 = vmax.f32 %v941, 0.0
    %v955 = vmax.f32 %v942, 0.0
    %v956 = vmax.f32 %v943, 0.0
    %v957 = vmax.f32 %v944, 0.0
    %v958 = vmax.f32 %v945, 0.0
    %v959 = vmax.f32 %v946, 0.0
    %v960 = vmax.f32 %v947, 0.0
    %v961 = vmax.f32 %v948, 0.0
    %962 = vst [vmem:[%s6] sm:$0xff] %v949
    %963 = vst [vmem:[%s6 + $0x8] sm:$0xff] %v950
    %964 = vst [vmem:[%s6 + $0x10] sm:$0xff] %v951
    %965 = vst [vmem:[%s6 + $0x18] sm:$0xff] %v952
    %966 = vst [vmem:[%s6 + $0x20] sm:$0xff] %v953
    %967 = vst [vmem:[%s6 + $0x28] sm:$0xff] %v954
    %968 = vst [vmem:[%s6 + $0x30] sm:$0xff] %v955
    %969 = vst [vmem:[%s6 + $0x38] sm:$0xff] %v956
    %970 = vst [vmem:[%s6 + $0x40] sm:$0xff] %v957
    %971 = vst [vmem:[%s6 + $0x48] sm:$0xff] %v958
    %972 = vst [vmem:[%s6 + $0x50] sm:$0xff] %v959
    %973 = vst [vmem:[%s6 + $0x58] sm:$0xff] %v960
    %974 = vst [vmem:[%s6 + $0x60] sm:$0xff] %v961
    // Predicated region
    $region18: #{conv_feature_extractor.2} parent=1 // pred_check
      _
    $region19: #{conv_feature_extractor.2} parent=1 // pred_check_branch
      %976 = sbr.rel (0) target = $region21
    $region20: #{conv_feature_extractor.2} parent=1 // pred_region
      _
    $region21: #{conv_feature_extractor.2} parent=1 // pred_fallthru
      _
    // Predicated region
    $region22: #{conv_feature_extractor.2} parent=1 // pred_check
      _
    $region23: #{conv_feature_extractor.2} parent=1 // pred_check_branch
      %978 = sbr.rel (0) target = $region25
    $region24: #{conv_feature_extractor.2} parent=1 // pred_region
      _
    $region25: #{conv_feature_extractor.2} parent=1 // pred_fallthru
      _

</llo_original>
